<compile_context>
chip_gen: v5e
topology: v5e:2x2
jax: 0.10.0
libtpu: 0.0.40
codegen_flags: <defaults>
</compile_context>

<pallas_src>
import jax
import jax.numpy as jnp
from jax import lax
from jax.experimental import pallas as pl
from jax.experimental.pallas import tpu as pltpu


def _make_block_kernel(h, w):
    hw = h * w

    def kernel(masks_ref, x_ref, wdw_ref, b1_ref, wpw_ref, b2_ref, o_ref):
        """One grid step = one batch image.

        masks_ref: (9, HW)      VMEM, per-tap boundary-validity masks (1.0 / 0.0)
        x_ref    : (1, C, HW)   VMEM, flattened NCHW image of batch n
        wdw_ref  : (9, C, 1)    VMEM, depthwise 3x3 weights with BN1 scale folded in
        b1_ref   : (C, 1)       VMEM, folded BN1 bias
        wpw_ref  : (C, Cout, 1) VMEM, pointwise weights with BN2 scale folded in
        b2_ref   : (Cout, 1)    VMEM, folded BN2 bias
        o_ref    : (1, Cout, HW) output (flattened NCHW)
        """
        C = x_ref.shape[1]
        xv = x_ref[0]                                     # (C, HW) f32

        # ---- depthwise 3x3 (stride 1) + folded BN1 + ReLU -----------------------
        # Center tap initializes the accumulator together with the folded bias.
        acc = xv * wdw_ref[4] + b1_ref[...]               # (C,HW)*(C,1)+(C,1)
        tap = 0
        for dy in (-1, 0, 1):
            for dx in (-1, 0, 1):
                if dy == 0 and dx == 0:
                    tap += 1
                    continue
                off = dy * w + dx                          # flattened tap offset
                rolled = pltpu.roll(xv, shift=(-off) % hw, axis=1)   # XLU rotate
                acc = acc + rolled * masks_ref[tap:tap + 1, :] * wdw_ref[tap]
                tap += 1
        dw = jnp.maximum(acc, 0.0)                         # (C, HW)

        # ---- pointwise 1x1 + folded BN2 + ReLU (VPU; C/Cout too small for MXU) --
        out = dw[0:1, :] * wpw_ref[0] + b2_ref[...]        # (1,HW)*(Cout,1)+(Cout,1)
        for c in range(1, C):
            out = out + dw[c:c + 1, :] * wpw_ref[c]
        o_ref[0] = jnp.maximum(out, 0.0).astype(o_ref.dtype)

    return kernel


def mobilenet_block(x_nchw, w_dw, w_pw, bn1, bn2, eps=1e-5):
    """x_nchw: (N, C, H, W) float32. Returns (N, Cout, H, W) float32 (NCHW in/out)."""
    g1, be1, m1, v1 = bn1
    g2, be2, m2, v2 = bn2

    N, C, H, W = x_nchw.shape
    Cout = w_pw.shape[1]
    HW = H * W

    # --- glue (plain JAX, weight-sized only): fold eval-mode BN into the conv weights.
    s1 = g1 / jnp.sqrt(v1 + eps)                            # (C,)
    b1 = be1 - m1 * s1                                      # (C,)
    s2 = g2 / jnp.sqrt(v2 + eps)                            # (Cout,)
    b2 = be2 - m2 * s2                                      # (Cout,)

    # depthwise (3,3,C) -> (9, C, 1), BN1 scale folded; taps ordered (dy, dx) row-major.
    wdw = (w_dw * s1[None, None, :]).reshape(9, C)[:, :, None]
    # pointwise (C, Cout) -> (C, Cout, 1), BN2 scale folded.
    wpw = (w_pw * s2[None, :])[:, :, None]
    b1v = b1[:, None]                                       # (C, 1)
    b2v = b2[:, None]                                       # (Cout, 1)

    # Per-tap validity masks on the flattened H*W axis (zero-pad semantics + kill
    # the circular-roll wraparound, which only ever lands on masked positions).
    hh = jnp.repeat(jnp.arange(H), W)                       # h of flattened position
    ww = jnp.tile(jnp.arange(W), H)                         # w of flattened position
    mask_list = []
    for dy in (-1, 0, 1):
        for dx in (-1, 0, 1):
            m = jnp.ones((HW,), jnp.float32)
            if dy == -1:
                m = m * (hh > 0)
            if dy == 1:
                m = m * (hh < H - 1)
            if dx == -1:
                m = m * (ww > 0)
            if dx == 1:
                m = m * (ww < W - 1)
            mask_list.append(m)
    masks = jnp.stack(mask_list).astype(jnp.float32)        # (9, HW)

    x_flat = x_nchw.reshape(N, C, HW)                       # free contiguous reshape

    out_flat = pl.pallas_call(
        _make_block_kernel(H, W),
        out_shape=jax.ShapeDtypeStruct((N, Cout, HW), jnp.float32),
        grid_spec=pltpu.PrefetchScalarGridSpec(
            num_scalar_prefetch=0,
            grid=(N,),
            in_specs=[
                pl.BlockSpec((9, HW), lambda n: (0, 0)),          # masks (const)
                pl.BlockSpec((1, C, HW), lambda n: (n, 0, 0)),    # x (per batch)
                pl.BlockSpec((9, C, 1), lambda n: (0, 0, 0)),     # wdw (const)
                pl.BlockSpec((C, 1), lambda n: (0, 0)),           # b1  (const)
                pl.BlockSpec((C, Cout, 1), lambda n: (0, 0, 0)),  # wpw (const)
                pl.BlockSpec((Cout, 1), lambda n: (0, 0)),        # b2  (const)
            ],
            out_specs=pl.BlockSpec((1, Cout, HW), lambda n: (n, 0, 0)),
        ),
        compiler_params=pltpu.CompilerParams(
            dimension_semantics=("parallel",),
            vmem_limit_bytes=32 * 1024 * 1024),
    )(masks, x_flat, wdw, b1v, wpw, b2v)

    return out_flat.reshape(N, Cout, H, W)


def _reference(x_nchw, w_dw, w_pw, bn1, bn2, eps=1e-5):
    """Pure-JAX reference (eval-mode BN), NCHW, for correctness checking."""
    g1, be1, m1, v1 = bn1
    g2, be2, m2, v2 = bn2
    C = x_nchw.shape[1]

    wd = jnp.transpose(w_dw, (2, 0, 1))[:, None, :, :]              # (C,1,3,3)
    y = lax.conv_general_dilated(
        x_nchw, wd, window_strides=(1, 1), padding=((1, 1), (1, 1)),
        dimension_numbers=("NCHW", "OIHW", "NCHW"), feature_group_count=C)
    y = (y - m1[None, :, None, None]) / jnp.sqrt(v1 + eps)[None, :, None, None]
    y = y * g1[None, :, None, None] + be1[None, :, None, None]
    y = jnp.maximum(y, 0.0)

    wp = jnp.transpose(w_pw, (1, 0))[:, :, None, None]              # (Cout,C,1,1)
    z = lax.conv_general_dilated(
        y, wp, window_strides=(1, 1), padding=((0, 0), (0, 0)),
        dimension_numbers=("NCHW", "OIHW", "NCHW"))
    z = (z - m2[None, :, None, None]) / jnp.sqrt(v2 + eps)[None, :, None, None]
    z = z * g2[None, :, None, None] + be2[None, :, None, None]
    return jnp.maximum(z, 0.0)


if __name__ == "__main__":
    N, C, H, W = 2, 4, 16, 16
    Cout = 8

    key = jax.random.PRNGKey(0)
    ks = jax.random.split(key, 8)

    x = jax.random.normal(ks[0], (N, C, H, W), jnp.float32)

    # Parameters (deterministic, synthetic). PyTorch conv weight layouts are
    # (C,1,3,3) and (Cout,C,1,1); we keep them as (3,3,C) and (C,Cout).
    w_dw = 0.2 * jax.random.normal(ks[1], (3, 3, C), jnp.float32)
    w_pw = 0.2 * jax.random.normal(ks[2], (C, Cout), jnp.float32)

    bn1 = (1.0 + 0.1 * jax.random.normal(ks[3], (C,), jnp.float32),     # gamma
           0.1 * jax.random.normal(ks[4], (C,), jnp.float32),           # beta
           0.1 * jax.random.normal(ks[5], (C,), jnp.float32),           # running_mean
           jnp.abs(jax.random.normal(ks[6], (C,), jnp.float32)) + 0.5)  # running_var
    bn2 = (1.0 + 0.1 * jax.random.normal(ks[7], (Cout,), jnp.float32),
           jnp.zeros((Cout,), jnp.float32) + 0.05,
           jnp.zeros((Cout,), jnp.float32),
           jnp.ones((Cout,), jnp.float32))

    out = mobilenet_block(x, w_dw, w_pw, bn1, bn2)
    out = jax.block_until_ready(out)

    ref = _reference(x, w_dw, w_pw, bn1, bn2)
    assert out.shape == (N, Cout, H, W), out.shape
    assert jnp.allclose(out, ref, atol=1e-4, rtol=1e-4), \
        float(jnp.max(jnp.abs(out - ref)))

    print("KERNEL_OK")
</pallas_src>

<mosaic_0001>
module attributes {stable_mosaic.version = 11 : i64} {
  func.func @kernel(%arg0: i32, %arg1: memref<9x256xf32, #tpu.memory_space<vmem>>, %arg2: memref<1x4x256xf32, #tpu.memory_space<vmem>>, %arg3: memref<9x4x1xf32, #tpu.memory_space<vmem>>, %arg4: memref<4x1xf32, #tpu.memory_space<vmem>>, %arg5: memref<4x8x1xf32, #tpu.memory_space<vmem>>, %arg6: memref<8x1xf32, #tpu.memory_space<vmem>>, %arg7: memref<1x8x256xf32, #tpu.memory_space<vmem>>) attributes {dimension_semantics = [#tpu.dimension_semantics<parallel>], iteration_bounds = array<i64: 2>, scalar_prefetch = 0 : i64, scratch_operands = 0 : i64, tpu.core_type = #tpu.core_type<tc>, window_params = [{pipeline_mode = #tpu.pipeline_mode<synchronous>, transform_indices = @transform_0, window_bounds = array<i64: 9, 256>}, {transform_indices = @transform_1, window_bounds = array<i64: 1, 4, 256>}, {pipeline_mode = #tpu.pipeline_mode<synchronous>, transform_indices = @transform_2, window_bounds = array<i64: 9, 4, 1>}, {pipeline_mode = #tpu.pipeline_mode<synchronous>, transform_indices = @transform_3, window_bounds = array<i64: 4, 1>}, {pipeline_mode = #tpu.pipeline_mode<synchronous>, transform_indices = @transform_4, window_bounds = array<i64: 4, 8, 1>}, {pipeline_mode = #tpu.pipeline_mode<synchronous>, transform_indices = @transform_5, window_bounds = array<i64: 8, 1>}, {transform_indices = @transform_6, window_bounds = array<i64: 1, 8, 256>}]} {
    %c0 = arith.constant 0 : index
    %c0_0 = arith.constant 0 : index
    %c0_1 = arith.constant 0 : index
    %0 = vector.load %arg2[%c0, %c0_0, %c0_1] : memref<1x4x256xf32, #tpu.memory_space<vmem>>, vector<1x4x256xf32>
    %1 = vector.shape_cast %0 : vector<1x4x256xf32> to vector<4x256xf32>
    %c4 = arith.constant 4 : index
    %c0_2 = arith.constant 0 : index
    %c0_3 = arith.constant 0 : index
    %2 = vector.load %arg3[%c4, %c0_2, %c0_3] : memref<9x4x1xf32, #tpu.memory_space<vmem>>, vector<1x4x1xf32>
    %3 = vector.shape_cast %2 : vector<1x4x1xf32> to vector<4x1xf32>
    %4 = vector.broadcast %3 : vector<4x1xf32> to vector<4x256xf32>
    %5 = arith.mulf %1, %4 : vector<4x256xf32>
    %c0_4 = arith.constant 0 : index
    %c0_5 = arith.constant 0 : index
    %6 = vector.load %arg4[%c0_4, %c0_5] : memref<4x1xf32, #tpu.memory_space<vmem>>, vector<4x1xf32>
    %7 = vector.broadcast %6 : vector<4x1xf32> to vector<4x256xf32>
    %8 = arith.addf %5, %7 : vector<4x256xf32>
    %c17_i32 = arith.constant 17 : i32
    %9 = tpu.dynamic_rotate %1 by %c17_i32 dim 1 : vector<4x256xf32>, i32 -> vector<4x256xf32>
    %c0_6 = arith.constant 0 : index
    %c0_7 = arith.constant 0 : index
    %10 = vector.load %arg1[%c0_6, %c0_7] : memref<9x256xf32, #tpu.memory_space<vmem>>, vector<1x256xf32>
    %11 = vector.broadcast %10 : vector<1x256xf32> to vector<4x256xf32>
    %12 = arith.mulf %9, %11 : vector<4x256xf32>
    %c0_8 = arith.constant 0 : index
    %c0_9 = arith.constant 0 : index
    %c0_10 = arith.constant 0 : index
    %13 = vector.load %arg3[%c0_8, %c0_9, %c0_10] : memref<9x4x1xf32, #tpu.memory_space<vmem>>, vector<1x4x1xf32>
    %14 = vector.shape_cast %13 : vector<1x4x1xf32> to vector<4x1xf32>
    %15 = vector.broadcast %14 : vector<4x1xf32> to vector<4x256xf32>
    %16 = arith.mulf %12, %15 : vector<4x256xf32>
    %17 = arith.addf %8, %16 : vector<4x256xf32>
    %c16_i32 = arith.constant 16 : i32
    %18 = tpu.dynamic_rotate %1 by %c16_i32 dim 1 : vector<4x256xf32>, i32 -> vector<4x256xf32>
    %c1 = arith.constant 1 : index
    %c0_11 = arith.constant 0 : index
    %19 = vector.load %arg1[%c1, %c0_11] : memref<9x256xf32, #tpu.memory_space<vmem>>, vector<1x256xf32>
    %20 = vector.broadcast %19 : vector<1x256xf32> to vector<4x256xf32>
    %21 = arith.mulf %18, %20 : vector<4x256xf32>
    %c1_12 = arith.constant 1 : index
    %c0_13 = arith.constant 0 : index
    %c0_14 = arith.constant 0 : index
    %22 = vector.load %arg3[%c1_12, %c0_13, %c0_14] : memref<9x4x1xf32, #tpu.memory_space<vmem>>, vector<1x4x1xf32>
    %23 = vector.shape_cast %22 : vector<1x4x1xf32> to vector<4x1xf32>
    %24 = vector.broadcast %23 : vector<4x1xf32> to vector<4x256xf32>
    %25 = arith.mulf %21, %24 : vector<4x256xf32>
    %26 = arith.addf %17, %25 : vector<4x256xf32>
    %c15_i32 = arith.constant 15 : i32
    %27 = tpu.dynamic_rotate %1 by %c15_i32 dim 1 : vector<4x256xf32>, i32 -> vector<4x256xf32>
    %c2 = arith.constant 2 : index
    %c0_15 = arith.constant 0 : index
    %28 = vector.load %arg1[%c2, %c0_15] : memref<9x256xf32, #tpu.memory_space<vmem>>, vector<1x256xf32>
    %29 = vector.broadcast %28 : vector<1x256xf32> to vector<4x256xf32>
    %30 = arith.mulf %27, %29 : vector<4x256xf32>
    %c2_16 = arith.constant 2 : index
    %c0_17 = arith.constant 0 : index
    %c0_18 = arith.constant 0 : index
    %31 = vector.load %arg3[%c2_16, %c0_17, %c0_18] : memref<9x4x1xf32, #tpu.memory_space<vmem>>, vector<1x4x1xf32>
    %32 = vector.shape_cast %31 : vector<1x4x1xf32> to vector<4x1xf32>
    %33 = vector.broadcast %32 : vector<4x1xf32> to vector<4x256xf32>
    %34 = arith.mulf %30, %33 : vector<4x256xf32>
    %35 = arith.addf %26, %34 : vector<4x256xf32>
    %c1_i32 = arith.constant 1 : i32
    %36 = tpu.dynamic_rotate %1 by %c1_i32 dim 1 : vector<4x256xf32>, i32 -> vector<4x256xf32>
    %c3 = arith.constant 3 : index
    %c0_19 = arith.constant 0 : index
    %37 = vector.load %arg1[%c3, %c0_19] : memref<9x256xf32, #tpu.memory_space<vmem>>, vector<1x256xf32>
    %38 = vector.broadcast %37 : vector<1x256xf32> to vector<4x256xf32>
    %39 = arith.mulf %36, %38 : vector<4x256xf32>
    %c3_20 = arith.constant 3 : index
    %c0_21 = arith.constant 0 : index
    %c0_22 = arith.constant 0 : index
    %40 = vector.load %arg3[%c3_20, %c0_21, %c0_22] : memref<9x4x1xf32, #tpu.memory_space<vmem>>, vector<1x4x1xf32>
    %41 = vector.shape_cast %40 : vector<1x4x1xf32> to vector<4x1xf32>
    %42 = vector.broadcast %41 : vector<4x1xf32> to vector<4x256xf32>
    %43 = arith.mulf %39, %42 : vector<4x256xf32>
    %44 = arith.addf %35, %43 : vector<4x256xf32>
    %c255_i32 = arith.constant 255 : i32
    %45 = tpu.dynamic_rotate %1 by %c255_i32 dim 1 : vector<4x256xf32>, i32 -> vector<4x256xf32>
    %c5 = arith.constant 5 : index
    %c0_23 = arith.constant 0 : index
    %46 = vector.load %arg1[%c5, %c0_23] : memref<9x256xf32, #tpu.memory_space<vmem>>, vector<1x256xf32>
    %47 = vector.broadcast %46 : vector<1x256xf32> to vector<4x256xf32>
    %48 = arith.mulf %45, %47 : vector<4x256xf32>
    %c5_24 = arith.constant 5 : index
    %c0_25 = arith.constant 0 : index
    %c0_26 = arith.constant 0 : index
    %49 = vector.load %arg3[%c5_24, %c0_25, %c0_26] : memref<9x4x1xf32, #tpu.memory_space<vmem>>, vector<1x4x1xf32>
    %50 = vector.shape_cast %49 : vector<1x4x1xf32> to vector<4x1xf32>
    %51 = vector.broadcast %50 : vector<4x1xf32> to vector<4x256xf32>
    %52 = arith.mulf %48, %51 : vector<4x256xf32>
    %53 = arith.addf %44, %52 : vector<4x256xf32>
    %c241_i32 = arith.constant 241 : i32
    %54 = tpu.dynamic_rotate %1 by %c241_i32 dim 1 : vector<4x256xf32>, i32 -> vector<4x256xf32>
    %c6 = arith.constant 6 : index
    %c0_27 = arith.constant 0 : index
    %55 = vector.load %arg1[%c6, %c0_27] : memref<9x256xf32, #tpu.memory_space<vmem>>, vector<1x256xf32>
    %56 = vector.broadcast %55 : vector<1x256xf32> to vector<4x256xf32>
    %57 = arith.mulf %54, %56 : vector<4x256xf32>
    %c6_28 = arith.constant 6 : index
    %c0_29 = arith.constant 0 : index
    %c0_30 = arith.constant 0 : index
    %58 = vector.load %arg3[%c6_28, %c0_29, %c0_30] : memref<9x4x1xf32, #tpu.memory_space<vmem>>, vector<1x4x1xf32>
    %59 = vector.shape_cast %58 : vector<1x4x1xf32> to vector<4x1xf32>
    %60 = vector.broadcast %59 : vector<4x1xf32> to vector<4x256xf32>
    %61 = arith.mulf %57, %60 : vector<4x256xf32>
    %62 = arith.addf %53, %61 : vector<4x256xf32>
    %c240_i32 = arith.constant 240 : i32
    %63 = tpu.dynamic_rotate %1 by %c240_i32 dim 1 : vector<4x256xf32>, i32 -> vector<4x256xf32>
    %c7 = arith.constant 7 : index
    %c0_31 = arith.constant 0 : index
    %64 = vector.load %arg1[%c7, %c0_31] : memref<9x256xf32, #tpu.memory_space<vmem>>, vector<1x256xf32>
    %65 = vector.broadcast %64 : vector<1x256xf32> to vector<4x256xf32>
    %66 = arith.mulf %63, %65 : vector<4x256xf32>
    %c7_32 = arith.constant 7 : index
    %c0_33 = arith.constant 0 : index
    %c0_34 = arith.constant 0 : index
    %67 = vector.load %arg3[%c7_32, %c0_33, %c0_34] : memref<9x4x1xf32, #tpu.memory_space<vmem>>, vector<1x4x1xf32>
    %68 = vector.shape_cast %67 : vector<1x4x1xf32> to vector<4x1xf32>
    %69 = vector.broadcast %68 : vector<4x1xf32> to vector<4x256xf32>
    %70 = arith.mulf %66, %69 : vector<4x256xf32>
    %71 = arith.addf %62, %70 : vector<4x256xf32>
    %c239_i32 = arith.constant 239 : i32
    %72 = tpu.dynamic_rotate %1 by %c239_i32 dim 1 : vector<4x256xf32>, i32 -> vector<4x256xf32>
    %c8 = arith.constant 8 : index
    %c0_35 = arith.constant 0 : index
    %73 = vector.load %arg1[%c8, %c0_35] : memref<9x256xf32, #tpu.memory_space<vmem>>, vector<1x256xf32>
    %74 = vector.broadcast %73 : vector<1x256xf32> to vector<4x256xf32>
    %75 = arith.mulf %72, %74 : vector<4x256xf32>
    %c8_36 = arith.constant 8 : index
    %c0_37 = arith.constant 0 : index
    %c0_38 = arith.constant 0 : index
    %76 = vector.load %arg3[%c8_36, %c0_37, %c0_38] : memref<9x4x1xf32, #tpu.memory_space<vmem>>, vector<1x4x1xf32>
    %77 = vector.shape_cast %76 : vector<1x4x1xf32> to vector<4x1xf32>
    %78 = vector.broadcast %77 : vector<4x1xf32> to vector<4x256xf32>
    %79 = arith.mulf %75, %78 : vector<4x256xf32>
    %80 = arith.addf %71, %79 : vector<4x256xf32>
    %cst = arith.constant 0.000000e+00 : f32
    %81 = vector.broadcast %cst : f32 to vector<4x256xf32>
    %82 = arith.maximumf %80, %81 : vector<4x256xf32>
    %83 = vector.extract_strided_slice %82 {offsets = [0, 0], sizes = [1, 256], strides = [1, 1]} : vector<4x256xf32> to vector<1x256xf32>
    %c0_39 = arith.constant 0 : index
    %c0_40 = arith.constant 0 : index
    %c0_41 = arith.constant 0 : index
    %84 = vector.load %arg5[%c0_39, %c0_40, %c0_41] : memref<4x8x1xf32, #tpu.memory_space<vmem>>, vector<1x8x1xf32>
    %85 = vector.shape_cast %84 : vector<1x8x1xf32> to vector<8x1xf32>
    %86 = vector.broadcast %83 : vector<1x256xf32> to vector<8x256xf32>
    %87 = vector.broadcast %85 : vector<8x1xf32> to vector<8x256xf32>
    %88 = arith.mulf %86, %87 : vector<8x256xf32>
    %c0_42 = arith.constant 0 : index
    %c0_43 = arith.constant 0 : index
    %89 = vector.load %arg6[%c0_42, %c0_43] : memref<8x1xf32, #tpu.memory_space<vmem>>, vector<8x1xf32>
    %90 = vector.broadcast %89 : vector<8x1xf32> to vector<8x256xf32>
    %91 = arith.addf %88, %90 : vector<8x256xf32>
    %92 = vector.extract_strided_slice %82 {offsets = [1, 0], sizes = [1, 256], strides = [1, 1]} : vector<4x256xf32> to vector<1x256xf32>
    %c1_44 = arith.constant 1 : index
    %c0_45 = arith.constant 0 : index
    %c0_46 = arith.constant 0 : index
    %93 = vector.load %arg5[%c1_44, %c0_45, %c0_46] : memref<4x8x1xf32, #tpu.memory_space<vmem>>, vector<1x8x1xf32>
    %94 = vector.shape_cast %93 : vector<1x8x1xf32> to vector<8x1xf32>
    %95 = vector.broadcast %92 : vector<1x256xf32> to vector<8x256xf32>
    %96 = vector.broadcast %94 : vector<8x1xf32> to vector<8x256xf32>
    %97 = arith.mulf %95, %96 : vector<8x256xf32>
    %98 = arith.addf %91, %97 : vector<8x256xf32>
    %99 = vector.extract_strided_slice %82 {offsets = [2, 0], sizes = [1, 256], strides = [1, 1]} : vector<4x256xf32> to vector<1x256xf32>
    %c2_47 = arith.constant 2 : index
    %c0_48 = arith.constant 0 : index
    %c0_49 = arith.constant 0 : index
    %100 = vector.load %arg5[%c2_47, %c0_48, %c0_49] : memref<4x8x1xf32, #tpu.memory_space<vmem>>, vector<1x8x1xf32>
    %101 = vector.shape_cast %100 : vector<1x8x1xf32> to vector<8x1xf32>
    %102 = vector.broadcast %99 : vector<1x256xf32> to vector<8x256xf32>
    %103 = vector.broadcast %101 : vector<8x1xf32> to vector<8x256xf32>
    %104 = arith.mulf %102, %103 : vector<8x256xf32>
    %105 = arith.addf %98, %104 : vector<8x256xf32>
    %106 = vector.extract_strided_slice %82 {offsets = [3, 0], sizes = [1, 256], strides = [1, 1]} : vector<4x256xf32> to vector<1x256xf32>
    %c3_50 = arith.constant 3 : index
    %c0_51 = arith.constant 0 : index
    %c0_52 = arith.constant 0 : index
    %107 = vector.load %arg5[%c3_50, %c0_51, %c0_52] : memref<4x8x1xf32, #tpu.memory_space<vmem>>, vector<1x8x1xf32>
    %108 = vector.shape_cast %107 : vector<1x8x1xf32> to vector<8x1xf32>
    %109 = vector.broadcast %106 : vector<1x256xf32> to vector<8x256xf32>
    %110 = vector.broadcast %108 : vector<8x1xf32> to vector<8x256xf32>
    %111 = arith.mulf %109, %110 : vector<8x256xf32>
    %112 = arith.addf %105, %111 : vector<8x256xf32>
    %cst_53 = arith.constant 0.000000e+00 : f32
    %113 = vector.broadcast %cst_53 : f32 to vector<8x256xf32>
    %114 = arith.maximumf %112, %113 : vector<8x256xf32>
    %c0_54 = arith.constant 0 : index
    %c0_55 = arith.constant 0 : index
    %c0_56 = arith.constant 0 : index
    %115 = vector.load %arg7[%c0_54, %c0_55, %c0_56] : memref<1x8x256xf32, #tpu.memory_space<vmem>>, vector<1x8x256xf32>
    %116 = vector.shape_cast %115 : vector<1x8x256xf32> to vector<8x256xf32>
    %117 = vector.shape_cast %114 : vector<8x256xf32> to vector<1x8x256xf32>
    tpu.vector_store %arg7[%c0_54, %c0_55, %c0_56], %117 {strides = array<i32>} : memref<1x8x256xf32, #tpu.memory_space<vmem>>, vector<1x8x256xf32>,
    return
  }
  func.func @transform_0(%arg0: i32) -> (i32, i32) {
    %c0_i32 = arith.constant 0 : i32
    %c0_i32_0 = arith.constant 0 : i32
    %c0_i32_1 = arith.constant 0 : i32
    return %c0_i32, %c0_i32_0 : i32, i32
  }
  func.func @transform_1(%arg0: i32) -> (i32, i32, i32) {
    %c0_i32 = arith.constant 0 : i32
    %c0_i32_0 = arith.constant 0 : i32
    %c0_i32_1 = arith.constant 0 : i32
    return %arg0, %c0_i32, %c0_i32_0 : i32, i32, i32
  }
  func.func @transform_2(%arg0: i32) -> (i32, i32, i32) {
    %c0_i32 = arith.constant 0 : i32
    %c0_i32_0 = arith.constant 0 : i32
    %c0_i32_1 = arith.constant 0 : i32
    %c0_i32_2 = arith.constant 0 : i32
    return %c0_i32, %c0_i32_0, %c0_i32_1 : i32, i32, i32
  }
  func.func @transform_3(%arg0: i32) -> (i32, i32) {
    %c0_i32 = arith.constant 0 : i32
    %c0_i32_0 = arith.constant 0 : i32
    %c0_i32_1 = arith.constant 0 : i32
    return %c0_i32, %c0_i32_0 : i32, i32
  }
  func.func @transform_4(%arg0: i32) -> (i32, i32, i32) {
    %c0_i32 = arith.constant 0 : i32
    %c0_i32_0 = arith.constant 0 : i32
    %c0_i32_1 = arith.constant 0 : i32
    %c0_i32_2 = arith.constant 0 : i32
    return %c0_i32, %c0_i32_0, %c0_i32_1 : i32, i32, i32
  }
  func.func @transform_5(%arg0: i32) -> (i32, i32) {
    %c0_i32 = arith.constant 0 : i32
    %c0_i32_0 = arith.constant 0 : i32
    %c0_i32_1 = arith.constant 0 : i32
    return %c0_i32, %c0_i32_0 : i32, i32
  }
  func.func @transform_6(%arg0: i32) -> (i32, i32, i32) {
    %c0_i32 = arith.constant 0 : i32
    %c0_i32_0 = arith.constant 0 : i32
    %c0_i32_1 = arith.constant 0 : i32
    return %arg0, %c0_i32, %c0_i32_0 : i32, i32, i32
  }
}

</mosaic_0001>

<llo_original>
// kernel: tpu_custom_call.1
$region0: #{tpu_custom_call.1}
  #allocation0 [shape = 'u32[]', space=smem, size = 0x4, offset = 0x4, fixed_abs, tag = 'smem constant byte address 0x4 - core index']
  #allocation1 [shape = 'u32[72,128]{1,0:T(1,128)}', space=vmem, size = 0x9000, scoped, tag = 'internal scratch']
  %s0 = inlined_call_operand.vmem [shape: f32[9,256], index: 0, kind: input, shape index: {}]
  %s1 = inlined_call_operand.vmem [shape: f32[2,4,256], index: 1, kind: input, shape index: {}]
  %s2 = inlined_call_operand.vmem [shape: f32[9,4,1], index: 2, kind: input, shape index: {}]
  %s3 = inlined_call_operand.vmem [shape: f32[4,1], index: 3, kind: input, shape index: {}]
  %s4 = inlined_call_operand.vmem [shape: f32[4,8,1], index: 4, kind: input, shape index: {}]
  %s5 = inlined_call_operand.vmem [shape: f32[8,1], index: 5, kind: input, shape index: {}]
  %s6 = inlined_call_operand.hbm [shape: f32[2,8,256], index: 6, kind: output, shape index: {}]
  %s7 = sld [smem:[#allocation0]]
  $region57: #{tpu_custom_call.1} parent=0
    _
  %s9 = ssub.s32 1, %s7
  %s10 = scalar_select 0, %s9, %s7
  $region1: #{tpu_custom_call.1} parent=0
    #allocation2 [shape = 'u8[16384]{0}', space=vmem, size = 0x4000, scoped, tag = 'output window, operand 0']
    #allocation3 [shape = 's32[2]{0}', space=sflag, size = 0x8, scoped, tag = 'scoped memory for tpu_custom_call.1']
    %11 = vsyncpa [#allocation3], 0
    %s12 = scalar_lea.sflag [#allocation3], 1
    %13 = vsyncpa %s12, 0
    loop: start=0, step=1, limit=4
    $region2: #{tpu_custom_call.1} parent=1 // loop_pre_header
      _
    $region3: #{tpu_custom_call.1} parent=1 // loop_header
      %s15 = sphi 0, %s19
      %p16 = scmp.ge.s32.totalorder %s15, 4
      %s23 = sphi 0, %s23
      %s25 = sphi 0, %s23
      %s26 = sphi 0, %s25
      %s40 = sphi 0, %s26
      %s46 = sphi 0, %s48
      %s49 = sphi 0, %s46
      %s50 = sphi 0, %s49
      %s66 = sphi 0, %s50
      %s70 = sphi 0, %s70
      %s72 = sphi 0, %s70
      %s73 = sphi 0, %s72
      %s87 = sphi 0, %s73
      %s91 = sphi 0, %s91
      %s93 = sphi 0, %s91
      %s94 = sphi 0, %s93
      %s108 = sphi 0, %s94
      %s112 = sphi 0, %s112
      %s114 = sphi 0, %s112
      %s115 = sphi 0, %s114
      %s129 = sphi 0, %s115
      %s133 = sphi 0, %s133
      %s135 = sphi 0, %s133
      %s136 = sphi 0, %s135
      %s150 = sphi 0, %s136
      %s156 = sphi 0, %s158
      %s159 = sphi 0, %s156
      %s160 = sphi 0, %s159
      %s176 = sphi 0, %s160
    $region4: #{tpu_custom_call.1} parent=1 // loop_header_branch
      %18 = sbr.rel (%p16) target = $region8
    $region5: #{tpu_custom_call.1} parent=1 // loop_body
      %s20 = ssub.s32 %s15, 1
      %s21 = ssub.s32 %s15, 2
      %s22 = sadd.s32 %s15, 1
      %s24 = sadd.s32 %s23, 1
      %p27 = scmp.eq.s32.totalorder %s15, 1
      %p28 = scmp.ne.s32.totalorder %s23, %s25
      %p29 = scmp.eq.s32.totalorder %s15, 0
      %p30 = por %p28, %p29
      %p31 = scmp.ne.s32.totalorder %s23, %s25
      %p32 = scmp.eq.s32.totalorder %s20, 1
      %p33 = por %p31, %p32
      %p34 = scmp.ne.s32.totalorder %s25, %s26
      %p35 = scmp.eq.s32.totalorder %s20, 0
      %p36 = por %p34, %p35
      %p37 = scmp.ne.s32.totalorder %s25, %s26
      %p38 = scmp.eq.s32.totalorder %s21, 1
      %p39 = por %p37, %p38
      %p41 = scmp.ne.s32.totalorder %s26, %s40
      %p42 = scmp.eq.s32.totalorder %s21, 0
      %p43 = por %p41, %p42
      %s44 = ssub.s32 %s15, %s22
      %p45 = scmp.eq.s32.totalorder %s44, 0
      %s47 = sadd.s32 %s46, 1
      %s48 = scalar_select %p45, %s46, %s47
      %p51 = pneg %p45
      %p52 = scmp.eq.s32.totalorder %s15, 1
      %p53 = por %p51, %p52
      %p54 = scmp.ne.s32.totalorder %s46, %s49
      %p55 = scmp.eq.s32.totalorder %s15, 0
      %p56 = por %p54, %p55
      %p57 = scmp.ne.s32.totalorder %s46, %s49
      %p58 = scmp.eq.s32.totalorder %s20, 1
      %p59 = por %p57, %p58
      %p60 = scmp.ne.s32.totalorder %s49, %s50
      %p61 = scmp.eq.s32.totalorder %s20, 0
      %p62 = por %p60, %p61
      %p63 = scmp.ne.s32.totalorder %s49, %s50
      %p64 = scmp.eq.s32.totalorder %s21, 1
      %p65 = por %p63, %p64
      %p67 = scmp.ne.s32.totalorder %s50, %s66
      %p68 = scmp.eq.s32.totalorder %s21, 0
      %p69 = por %p67, %p68
      %s71 = sadd.s32 %s70, 1
      %p74 = scmp.eq.s32.totalorder %s15, 1
      %p75 = scmp.ne.s32.totalorder %s70, %s72
      %p76 = scmp.eq.s32.totalorder %s15, 0
      %p77 = por %p75, %p76
      %p78 = scmp.ne.s32.totalorder %s70, %s72
      %p79 = scmp.eq.s32.totalorder %s20, 1
      %p80 = por %p78, %p79
      %p81 = scmp.ne.s32.totalorder %s72, %s73
      %p82 = scmp.eq.s32.totalorder %s20, 0
      %p83 = por %p81, %p82
      %p84 = scmp.ne.s32.totalorder %s72, %s73
      %p85 = scmp.eq.s32.totalorder %s21, 1
      %p86 = por %p84, %p85
      %p88 = scmp.ne.s32.totalorder %s73, %s87
      %p89 = scmp.eq.s32.totalorder %s21, 0
      %p90 = por %p88, %p89
      %s92 = sadd.s32 %s91, 1
      %p95 = scmp.eq.s32.totalorder %s15, 1
      %p96 = scmp.ne.s32.totalorder %s91, %s93
      %p97 = scmp.eq.s32.totalorder %s15, 0
      %p98 = por %p96, %p97
      %p99 = scmp.ne.s32.totalorder %s91, %s93
      %p100 = scmp.eq.s32.totalorder %s20, 1
      %p101 = por %p99, %p100
      %p102 = scmp.ne.s32.totalorder %s93, %s94
      %p103 = scmp.eq.s32.totalorder %s20, 0
      %p104 = por %p102, %p103
      %p105 = scmp.ne.s32.totalorder %s93, %s94
      %p106 = scmp.eq.s32.totalorder %s21, 1
      %p107 = por %p105, %p106
      %p109 = scmp.ne.s32.totalorder %s94, %s108
      %p110 = scmp.eq.s32.totalorder %s21, 0
      %p111 = por %p109, %p110
      %s113 = sadd.s32 %s112, 1
      %p116 = scmp.eq.s32.totalorder %s15, 1
      %p117 = scmp.ne.s32.totalorder %s112, %s114
      %p118 = scmp.eq.s32.totalorder %s15, 0
      %p119 = por %p117, %p118
      %p120 = scmp.ne.s32.totalorder %s112, %s114
      %p121 = scmp.eq.s32.totalorder %s20, 1
      %p122 = por %p120, %p121
      %p123 = scmp.ne.s32.totalorder %s114, %s115
      %p124 = scmp.eq.s32.totalorder %s20, 0
      %p125 = por %p123, %p124
      %p126 = scmp.ne.s32.totalorder %s114, %s115
      %p127 = scmp.eq.s32.totalorder %s21, 1
      %p128 = por %p126, %p127
      %p130 = scmp.ne.s32.totalorder %s115, %s129
      %p131 = scmp.eq.s32.totalorder %s21, 0
      %p132 = por %p130, %p131
      %s134 = sadd.s32 %s133, 1
      %p137 = scmp.eq.s32.totalorder %s15, 1
      %p138 = scmp.ne.s32.totalorder %s133, %s135
      %p139 = scmp.eq.s32.totalorder %s15, 0
      %p140 = por %p138, %p139
      %p141 = scmp.ne.s32.totalorder %s133, %s135
      %p142 = scmp.eq.s32.totalorder %s20, 1
      %p143 = por %p141, %p142
      %p144 = scmp.ne.s32.totalorder %s135, %s136
      %p145 = scmp.eq.s32.totalorder %s20, 0
      %p146 = por %p144, %p145
      %p147 = scmp.ne.s32.totalorder %s135, %s136
      %p148 = scmp.eq.s32.totalorder %s21, 1
      %p149 = por %p147, %p148
      %p151 = scmp.ne.s32.totalorder %s136, %s150
      %p152 = scmp.eq.s32.totalorder %s21, 0
      %p153 = por %p151, %p152
      %s154 = ssub.s32 %s15, %s22
      %p155 = scmp.eq.s32.totalorder %s154, 0
      %s157 = sadd.s32 %s156, 1
      %s158 = scalar_select %p155, %s156, %s157
      %p161 = pneg %p155
      %p162 = scmp.eq.s32.totalorder %s15, 1
      %p163 = por %p161, %p162
      %p164 = scmp.ne.s32.totalorder %s156, %s159
      %p165 = scmp.eq.s32.totalorder %s15, 0
      %p166 = por %p164, %p165
      %p167 = scmp.ne.s32.totalorder %s156, %s159
      %p168 = scmp.eq.s32.totalorder %s20, 1
      %p169 = por %p167, %p168
      %p170 = scmp.ne.s32.totalorder %s159, %s160
      %p171 = scmp.eq.s32.totalorder %s20, 0
      %p172 = por %p170, %p171
      %p173 = scmp.ne.s32.totalorder %s159, %s160
      %p174 = scmp.eq.s32.totalorder %s21, 1
      %p175 = por %p173, %p174
      %p177 = scmp.ne.s32.totalorder %s160, %s176
      %p178 = scmp.eq.s32.totalorder %s21, 0
      %p179 = por %p177, %p178
      %p180 = scmp.le.s32.totalorder 1, %s15
      %p181 = scmp.lt.s32.totalorder %s15, 3
      %p182 = pnand %p180, %p181
      %p183 = pneg %p182
      // Predicated region
      $region9: #{tpu_custom_call.1} parent=5 // pred_check
        _
      $region10: #{tpu_custom_call.1} parent=5 // pred_check_branch
        %185 = sbr.rel (%p182) target = $region12
      $region11: #{tpu_custom_call.1} parent=5 // pred_region
        %s186 = ssub.s32 %s15, 1
        // Predicated region
        $region13: #{tpu_custom_call.1} parent=11 // pred_check
          %p187 = pneg %p36
        $region14: #{tpu_custom_call.1} parent=11 // pred_check_branch
          %189 = sbr.rel (%p187) target = $region16
        $region15: #{tpu_custom_call.1} parent=11 // pred_region
          _
        $region16: #{tpu_custom_call.1} parent=11 // pred_fallthru
          _
        // Predicated region
        $region17: #{tpu_custom_call.1} parent=11 // pred_check
          %p190 = pneg %p83
        $region18: #{tpu_custom_call.1} parent=11 // pred_check_branch
          %192 = sbr.rel (%p190) target = $region20
        $region19: #{tpu_custom_call.1} parent=11 // pred_region
          _
        $region20: #{tpu_custom_call.1} parent=11 // pred_fallthru
          _
        // Predicated region
        $region21: #{tpu_custom_call.1} parent=11 // pred_check
          %p193 = pneg %p104
        $region22: #{tpu_custom_call.1} parent=11 // pred_check_branch
          %195 = sbr.rel (%p193) target = $region24
        $region23: #{tpu_custom_call.1} parent=11 // pred_region
          _
        $region24: #{tpu_custom_call.1} parent=11 // pred_fallthru
          _
        // Predicated region
        $region25: #{tpu_custom_call.1} parent=11 // pred_check
          %p196 = pneg %p125
        $region26: #{tpu_custom_call.1} parent=11 // pred_check_branch
          %198 = sbr.rel (%p196) target = $region28
        $region27: #{tpu_custom_call.1} parent=11 // pred_region
          _
        $region28: #{tpu_custom_call.1} parent=11 // pred_fallthru
          _
        // Predicated region
        $region29: #{tpu_custom_call.1} parent=11 // pred_check
          %p199 = pneg %p146
        $region30: #{tpu_custom_call.1} parent=11 // pred_check_branch
          %201 = sbr.rel (%p199) target = $region32
        $region31: #{tpu_custom_call.1} parent=11 // pred_region
          _
        $region32: #{tpu_custom_call.1} parent=11 // pred_fallthru
          _
      $region12: #{tpu_custom_call.1} parent=5 // pred_fallthru
        _
      %p202 = scmp.lt.s32.totalorder %s15, 2
      // Predicated region
      $region33: #{tpu_custom_call.1} parent=5 // pred_check
        %p203 = pneg %p202
      $region34: #{tpu_custom_call.1} parent=5 // pred_check_branch
        %205 = sbr.rel (%p203) target = $region36
      $region35: #{tpu_custom_call.1} parent=5 // pred_region
        // Predicated region
        $region37: #{tpu_custom_call.1} parent=35 // pred_check
          %p206 = pneg %p56
        $region38: #{tpu_custom_call.1} parent=35 // pred_check_branch
          %208 = sbr.rel (%p206) target = $region40
        $region39: #{tpu_custom_call.1} parent=35 // pred_region
          %p209 = scmp.lt.s32.totalorder %s15, 1
          %s210 = scalar_select %p209, %s15, 1
          %s211 = smul.addr %s210, 2
          %s212 = smul.addr %s211, 4
          %s213 = scalar_lea.vmem %s1, %s212
        $region40: #{tpu_custom_call.1} parent=35 // pred_fallthru
          _
      $region36: #{tpu_custom_call.1} parent=5 // pred_fallthru
        _
      %p214 = scmp.le.s32.totalorder 1, %s15
      %p215 = scmp.lt.s32.totalorder %s15, 3
      %p216 = pnand %p214, %p215
      %p217 = pneg %p216
      // Predicated region
      $region41: #{tpu_custom_call.1} parent=5 // pred_check
        _
      $region42: #{tpu_custom_call.1} parent=5 // pred_check_branch
        %219 = sbr.rel (%p216) target = $region44
      $region43: #{tpu_custom_call.1} parent=5 // pred_region
        %s220 = ssub.s32 %s15, 1
        %p221 = pneg %p36
        %p222 = pneg %p33
        %p223 = scmp.lt.s32.totalorder %s20, 1
        %s224 = scalar_select %p223, %s20, 1
        %s225 = smul.addr %s224, 2
        %s226 = smul.addr %s225, 4
        %s227 = scalar_lea.vmem %s1, %s226
        %p228 = pneg %p62
        %p229 = pneg %p59
        %p230 = pneg %p83
        %p231 = pneg %p80
        %p232 = pneg %p104
        %p233 = pneg %p101
        %p234 = pneg %p125
        %p235 = pneg %p122
        %p236 = pneg %p146
        %p237 = pneg %p143
        %p238 = pneg %p172
        %p239 = pneg %p169
        %s240 = sand.u32 %s159, 1
        %s241 = scalar_lea.sflag [#allocation3], %s240
        %s242 = sand.u32 %s159, 1
        %s243 = smul.addr %s242, 16
        %s244 = scalar_lea.vmem [#allocation2], %s243
        %p245 = scmp.lt.s32.totalorder %s20, 1
        %s246 = scalar_select %p245, %s20, 1
        %s247 = smul.addr %s246, 2
        %s248 = smul.addr %s247, 4
        %s249 = scalar_lea.vmem %s1, %s248
        %v250 = vld [vmem:[%s249] sm:$0xff]
        %s251 = scalar_lea.vmem %s2, 16
        %v252 = vld [vmem:[%s251] sm:$0xf]
        %254 = vset.pattern.permute.xlu0 0
        %255 = vperm.xlu0 %254, %v252
        %v256 = vpop.permute.xlu0 %255
        %v258 = vunpack.c.l.s4 839922192
        %v259 = vunpack.c.0.s8 %v258
        %v260 = vperm.slane %v256, %v259
        %v262 = vmul.f32 %v250, %v260
        %v263 = vld [vmem:[%s3] sm:$0xf]
        %265 = vset.pattern.permute.xlu0 0
        %266 = vperm.xlu0 %265, %v263
        %v267 = vpop.permute.xlu0 %266
        %v269 = vunpack.c.l.s4 839922192
        %v270 = vunpack.c.0.s8 %v269
        %v271 = vperm.slane %v267, %v270
        %v273 = vadd.f32 %v262, %v271
        %275 = vst [vmem:[#allocation1] ss:$2 sm:$0xff] %v250
        %v276 = vld.sshfl [vmem:[#allocation1] sm:$0xff pattern:$0x75316420]
        %v277 = vld.sshfl [vmem:[#allocation1 + $0x8] sm:$0xff pattern:$0x75316420]
        %280 = vrot.lane.b32.xlu0 %v276, 17
        %v281 = vpop.permute.xlu0 %280
        %282 = vrot.lane.b32.xlu0 %v277, 17
        %v283 = vpop.permute.xlu0 %282
        %v284 = vlaneseq
        %v285 = vand.u32 %v284, 127
        %vm286 = vcmp.lt.s32.totalorder %v285, 17
        %v287 = vsel %vm286, %v281, %v283
        %v288 = vsel %vm286, %v283, %v281
        %v289 = vld [vmem:[%s0] ss:$8 sm:$0x3]
        %v291 = vperm.slane %v289, 0
        %v292 = vperm.slane %v289, 1
        %v295 = vmul.f32 %v288, %v291
        %v296 = vmul.f32 %v287, %v292
        %v297 = vld [vmem:[%s2] sm:$0xf]
        %299 = vset.pattern.permute.xlu0 0
        %300 = vperm.xlu0 %299, %v297
        %v301 = vpop.permute.xlu0 %300
        %v303 = vmul.f32 %v295, %v301
        %v304 = vmul.f32 %v296, %v301
        %v307 = vrot.slane %v304, 4
        %vm308 = vcmask 1043456
        %v309 = vsel %vm308, %v303, %v307
        %v311 = vadd.f32 %v273, %v309
        %312 = vst [vmem:[#allocation1] ss:$2 sm:$0xff] %v250
        %v313 = vld.sshfl [vmem:[#allocation1] sm:$0xff pattern:$0x75316420]
        %v314 = vld.sshfl [vmem:[#allocation1 + $0x8] sm:$0xff pattern:$0x75316420]
        %317 = vrot.lane.b32.xlu0 %v313, 16
        %v318 = vpop.permute.xlu0 %317
        %319 = vrot.lane.b32.xlu0 %v314, 16
        %v320 = vpop.permute.xlu0 %319
        %vm321 = vcmp.lt.s32.totalorder %v285, 16
        %v322 = vsel %vm321, %v318, %v320
        %v323 = vsel %vm321, %v320, %v318
        %s324 = scalar_lea.vmem %s0, 1
        %v325 = vld [vmem:[%s324] ss:$8 sm:$0x3]
        %v327 = vperm.slane %v325, 0
        %v328 = vperm.slane %v325, 1
        %v331 = vmul.f32 %v323, %v327
        %v332 = vmul.f32 %v322, %v328
        %s333 = scalar_lea.vmem %s2, 4
        %v334 = vld [vmem:[%s333] sm:$0xf]
        %336 = vset.pattern.permute.xlu0 0
        %337 = vperm.xlu0 %336, %v334
        %v338 = vpop.permute.xlu0 %337
        %v340 = vmul.f32 %v331, %v338
        %v341 = vmul.f32 %v332, %v338
        %v344 = vrot.slane %v341, 4
        %v345 = vsel %vm308, %v340, %v344
        %v347 = vadd.f32 %v311, %v345
        %348 = vst [vmem:[#allocation1] ss:$2 sm:$0xff] %v250
        %v349 = vld.sshfl [vmem:[#allocation1] sm:$0xff pattern:$0x75316420]
        %v350 = vld.sshfl [vmem:[#allocation1 + $0x8] sm:$0xff pattern:$0x75316420]
        %353 = vrot.lane.b32.xlu0 %v349, 15
        %v354 = vpop.permute.xlu0 %353
        %355 = vrot.lane.b32.xlu0 %v350, 15
        %v356 = vpop.permute.xlu0 %355
        %vm357 = vcmp.lt.s32.totalorder %v285, 15
        %v358 = vsel %vm357, %v354, %v356
        %v359 = vsel %vm357, %v356, %v354
        %s360 = scalar_lea.vmem %s0, 2
        %v361 = vld [vmem:[%s360] ss:$8 sm:$0x3]
        %v363 = vperm.slane %v361, 0
        %v364 = vperm.slane %v361, 1
        %v367 = vmul.f32 %v359, %v363
        %v368 = vmul.f32 %v358, %v364
        %s369 = scalar_lea.vmem %s2, 8
        %v370 = vld [vmem:[%s369] sm:$0xf]
        %372 = vset.pattern.permute.xlu0 0
        %373 = vperm.xlu0 %372, %v370
        %v374 = vpop.permute.xlu0 %373
        %v376 = vmul.f32 %v367, %v374
        %v377 = vmul.f32 %v368, %v374
        %v380 = vrot.slane %v377, 4
        %v381 = vsel %vm308, %v376, %v380
        %v383 = vadd.f32 %v347, %v381
        %384 = vst [vmem:[#allocation1] ss:$2 sm:$0xff] %v250
        %v385 = vld.sshfl [vmem:[#allocation1] sm:$0xff pattern:$0x75316420]
        %v386 = vld.sshfl [vmem:[#allocation1 + $0x8] sm:$0xff pattern:$0x75316420]
        %389 = vrot.lane.b32.xlu0 %v385, 1
        %v390 = vpop.permute.xlu0 %389
        %391 = vrot.lane.b32.xlu0 %v386, 1
        %v392 = vpop.permute.xlu0 %391
        %vm393 = vcmp.lt.s32.totalorder %v285, 1
        %v394 = vsel %vm393, %v390, %v392
        %v395 = vsel %vm393, %v392, %v390
        %s396 = scalar_lea.vmem %s0, 3
        %v397 = vld [vmem:[%s396] ss:$8 sm:$0x3]
        %v399 = vperm.slane %v397, 0
        %v400 = vperm.slane %v397, 1
        %v403 = vmul.f32 %v395, %v399
        %v404 = vmul.f32 %v394, %v400
        %s405 = scalar_lea.vmem %s2, 12
        %v406 = vld [vmem:[%s405] sm:$0xf]
        %408 = vset.pattern.permute.xlu0 0
        %409 = vperm.xlu0 %408, %v406
        %v410 = vpop.permute.xlu0 %409
        %v412 = vmul.f32 %v403, %v410
        %v413 = vmul.f32 %v404, %v410
        %v416 = vrot.slane %v413, 4
        %v417 = vsel %vm308, %v412, %v416
        %v419 = vadd.f32 %v383, %v417
        %420 = vst [vmem:[#allocation1] ss:$2 sm:$0xff] %v250
        %v421 = vld.sshfl [vmem:[#allocation1] sm:$0xff pattern:$0x75316420]
        %v422 = vld.sshfl [vmem:[#allocation1 + $0x8] sm:$0xff pattern:$0x75316420]
        %425 = vrot.lane.b32.xlu0 %v421, 127
        %v426 = vpop.permute.xlu0 %425
        %427 = vrot.lane.b32.xlu0 %v422, 127
        %v428 = vpop.permute.xlu0 %427
        %vm429 = vcmp.lt.s32.totalorder %v285, 127
        %v430 = vsel %vm429, %v426, %v428
        %v431 = vsel %vm429, %v428, %v426
        %s432 = scalar_lea.vmem %s0, 5
        %v433 = vld [vmem:[%s432] ss:$8 sm:$0x3]
        %v435 = vperm.slane %v433, 0
        %v436 = vperm.slane %v433, 1
        %v439 = vmul.f32 %v430, %v435
        %v440 = vmul.f32 %v431, %v436
        %s441 = scalar_lea.vmem %s2, 20
        %v442 = vld [vmem:[%s441] sm:$0xf]
        %444 = vset.pattern.permute.xlu0 0
        %445 = vperm.xlu0 %444, %v442
        %v446 = vpop.permute.xlu0 %445
        %v448 = vmul.f32 %v439, %v446
        %v449 = vmul.f32 %v440, %v446
        %v452 = vrot.slane %v449, 4
        %v453 = vsel %vm308, %v448, %v452
        %v455 = vadd.f32 %v419, %v453
        %456 = vst [vmem:[#allocation1] ss:$2 sm:$0xff] %v250
        %v457 = vld.sshfl [vmem:[#allocation1] sm:$0xff pattern:$0x75316420]
        %v458 = vld.sshfl [vmem:[#allocation1 + $0x8] sm:$0xff pattern:$0x75316420]
        %461 = vrot.lane.b32.xlu0 %v457, 113
        %v462 = vpop.permute.xlu0 %461
        %463 = vrot.lane.b32.xlu0 %v458, 113
        %v464 = vpop.permute.xlu0 %463
        %vm465 = vcmp.lt.s32.totalorder %v285, 113
        %v466 = vsel %vm465, %v462, %v464
        %v467 = vsel %vm465, %v464, %v462
        %s468 = scalar_lea.vmem %s0, 6
        %v469 = vld [vmem:[%s468] ss:$8 sm:$0x3]
        %v471 = vperm.slane %v469, 0
        %v472 = vperm.slane %v469, 1
        %v475 = vmul.f32 %v466, %v471
        %v476 = vmul.f32 %v467, %v472
        %s477 = scalar_lea.vmem %s2, 24
        %v478 = vld [vmem:[%s477] sm:$0xf]
        %480 = vset.pattern.permute.xlu0 0
        %481 = vperm.xlu0 %480, %v478
        %v482 = vpop.permute.xlu0 %481
        %v484 = vmul.f32 %v475, %v482
        %v485 = vmul.f32 %v476, %v482
        %v488 = vrot.slane %v485, 4
        %v489 = vsel %vm308, %v484, %v488
        %v491 = vadd.f32 %v455, %v489
        %492 = vst [vmem:[#allocation1] ss:$2 sm:$0xff] %v250
        %v493 = vld.sshfl [vmem:[#allocation1] sm:$0xff pattern:$0x75316420]
        %v494 = vld.sshfl [vmem:[#allocation1 + $0x8] sm:$0xff pattern:$0x75316420]
        %497 = vrot.lane.b32.xlu0 %v493, 112
        %v498 = vpop.permute.xlu0 %497
        %499 = vrot.lane.b32.xlu0 %v494, 112
        %v500 = vpop.permute.xlu0 %499
        %vm501 = vcmp.lt.s32.totalorder %v285, 112
        %v502 = vsel %vm501, %v498, %v500
        %v503 = vsel %vm501, %v500, %v498
        %s504 = scalar_lea.vmem %s0, 7
        %v505 = vld [vmem:[%s504] ss:$8 sm:$0x3]
        %v507 = vperm.slane %v505, 0
        %v508 = vperm.slane %v505, 1
        %v511 = vmul.f32 %v502, %v507
        %v512 = vmul.f32 %v503, %v508
        %s513 = scalar_lea.vmem %s2, 28
        %v514 = vld [vmem:[%s513] sm:$0xf]
        %516 = vset.pattern.permute.xlu0 0
        %517 = vperm.xlu0 %516, %v514
        %v518 = vpop.permute.xlu0 %517
        %v520 = vmul.f32 %v511, %v518
        %v521 = vmul.f32 %v512, %v518
        %v524 = vrot.slane %v521, 4
        %v525 = vsel %vm308, %v520, %v524
        %v527 = vadd.f32 %v491, %v525
        %528 = vst [vmem:[#allocation1] ss:$2 sm:$0xff] %v250
        %v529 = vld.sshfl [vmem:[#allocation1] sm:$0xff pattern:$0x75316420]
        %v530 = vld.sshfl [vmem:[#allocation1 + $0x8] sm:$0xff pattern:$0x75316420]
        %533 = vrot.lane.b32.xlu0 %v529, 111
        %v534 = vpop.permute.xlu0 %533
        %535 = vrot.lane.b32.xlu0 %v530, 111
        %v536 = vpop.permute.xlu0 %535
        %vm537 = vcmp.lt.s32.totalorder %v285, 111
        %v538 = vsel %vm537, %v534, %v536
        %v539 = vsel %vm537, %v536, %v534
        %s540 = scalar_lea.vmem %s0, 16
        %v541 = vld [vmem:[%s540] ss:$8 sm:$0x3]
        %v543 = vperm.slane %v541, 0
        %v544 = vperm.slane %v541, 1
        %v547 = vmul.f32 %v538, %v543
        %v548 = vmul.f32 %v539, %v544
        %s549 = scalar_lea.vmem %s2, 32
        %v550 = vld [vmem:[%s549] sm:$0xf]
        %552 = vset.pattern.permute.xlu0 0
        %553 = vperm.xlu0 %552, %v550
        %v554 = vpop.permute.xlu0 %553
        %v556 = vmul.f32 %v547, %v554
        %v557 = vmul.f32 %v548, %v554
        %v560 = vrot.slane %v557, 4
        %v561 = vsel %vm308, %v556, %v560
        %v563 = vadd.f32 %v527, %v561
        %v564 = vmax.f32 %v563, 0.0
        %v565 = vld [vmem:[%s4] sm:$0xff]
        %v567 = vperm.slane %v564, 0
        %v568 = vperm.slane %v564, 4
        %v571 = vperm.slane %v567, 0
        %v572 = vperm.slane %v568, 0
        %574 = vset.pattern.permute.xlu0 0
        %575 = vperm.xlu0 %574, %v565
        %v576 = vpop.permute.xlu0 %575
        %v578 = vmul.f32 %v571, %v576
        %v579 = vmul.f32 %v572, %v576
        %v580 = vld [vmem:[%s5] sm:$0xff]
        %582 = vset.pattern.permute.xlu0 0
        %583 = vperm.xlu0 %582, %v580
        %v584 = vpop.permute.xlu0 %583
        %v586 = vadd.f32 %v578, %v584
        %v587 = vadd.f32 %v579, %v584
        %s588 = scalar_lea.vmem %s4, 8
        %v589 = vld [vmem:[%s588] sm:$0xff]
        %v590 = vperm.slane %v564, 1
        %v591 = vperm.slane %v564, 5
        %v594 = vperm.slane %v590, 1
        %v595 = vperm.slane %v591, 1
        %597 = vset.pattern.permute.xlu0 0
        %598 = vperm.xlu0 %597, %v589
        %v599 = vpop.permute.xlu0 %598
        %v601 = vmul.f32 %v594, %v599
        %v602 = vmul.f32 %v595, %v599
        %v603 = vadd.f32 %v586, %v601
        %v604 = vadd.f32 %v587, %v602
        %s605 = scalar_lea.vmem %s4, 16
        %v606 = vld [vmem:[%s605] sm:$0xff]
        %v607 = vperm.slane %v564, 2
        %v608 = vperm.slane %v564, 6
        %v611 = vperm.slane %v607, 2
        %v612 = vperm.slane %v608, 2
        %614 = vset.pattern.permute.xlu0 0
        %615 = vperm.xlu0 %614, %v606
        %v616 = vpop.permute.xlu0 %615
        %v618 = vmul.f32 %v611, %v616
        %v619 = vmul.f32 %v612, %v616
        %v620 = vadd.f32 %v603, %v618
        %v621 = vadd.f32 %v604, %v619
        %s622 = scalar_lea.vmem %s4, 24
        %v623 = vld [vmem:[%s622] sm:$0xff]
        %v624 = vperm.slane %v564, 3
        %v625 = vperm.slane %v564, 7
        %v628 = vperm.slane %v624, 3
        %v629 = vperm.slane %v625, 3
        %631 = vset.pattern.permute.xlu0 0
        %632 = vperm.xlu0 %631, %v623
        %v633 = vpop.permute.xlu0 %632
        %v635 = vmul.f32 %v628, %v633
        %v636 = vmul.f32 %v629, %v633
        %v637 = vadd.f32 %v620, %v635
        %v638 = vadd.f32 %v621, %v636
        %v639 = vmax.f32 %v637, 0.0
        %v640 = vmax.f32 %v638, 0.0
        %641 = vst [vmem:[%s244] sm:$0xff] %v639
        %642 = vst [vmem:[%s244 + $0x8] sm:$0xff] %v640
        %s643 = sand.u32 %s159, 1
        %s644 = scalar_lea.sflag [#allocation3], %s643
        %s645 = sand.u32 %s159, 1
        %s646 = smul.addr %s645, 16
        %s647 = scalar_lea.vmem [#allocation2], %s646
        // Predicated region
        $region45: #{tpu_custom_call.1} parent=43 // pred_check
          %p648 = pneg %p169
        $region46: #{tpu_custom_call.1} parent=43 // pred_check_branch
          %650 = sbr.rel (%p648) target = $region48
        $region47: #{tpu_custom_call.1} parent=43 // pred_region
          %652 = vsyncadd %s644, 0
          %s653 = smul.addr %s20, 2
          %s654 = smul.addr %s653, 8
          %s655 = scalar_lea.hbm %s6, %s654
          %s657 = sshll.u32 %s647, 4
          %s658 = int_to_ptr.vmem [resolvable:$true] %s657
          %s659 = sshll.u32 %s655, 4
          %s660 = int_to_ptr.hbm [resolvable:$true] %s659
          %662 = dma.vmem_to_hbm [thread:$0]  %s658, 256, %s660, %s644
        $region48: #{tpu_custom_call.1} parent=43 // pred_fallthru
          _
      $region44: #{tpu_custom_call.1} parent=5 // pred_fallthru
        _
      %p663 = scmp.le.s32.totalorder 2, %s15
      // Predicated region
      $region49: #{tpu_custom_call.1} parent=5 // pred_check
        %p664 = pneg %p663
      $region50: #{tpu_custom_call.1} parent=5 // pred_check_branch
        %666 = sbr.rel (%p664) target = $region52
      $region51: #{tpu_custom_call.1} parent=5 // pred_region
        %s667 = ssub.s32 %s15, 2
        // Predicated region
        $region53: #{tpu_custom_call.1} parent=51 // pred_check
          %p668 = pneg %p175
        $region54: #{tpu_custom_call.1} parent=51 // pred_check_branch
          %670 = sbr.rel (%p668) target = $region56
        $region55: #{tpu_custom_call.1} parent=51 // pred_region
          %s671 = sand.u32 %s160, 1
          %s672 = scalar_lea.sflag [#allocation3], %s671
          %s673 = sand.u32 %s160, 1
          %s674 = smul.addr %s673, 16
          %s675 = scalar_lea.vmem [#allocation2], %s674
          %677 = dma.done %s672, 256
        $region56: #{tpu_custom_call.1} parent=51 // pred_fallthru
          _
      $region52: #{tpu_custom_call.1} parent=5 // pred_fallthru
        _
    $region6: #{tpu_custom_call.1} parent=1 // loop_footer
      %s19 = sadd.s32 1, %s15
    $region7: #{tpu_custom_call.1} parent=1 // loop_footer_branch
      %14 = sbr.rel target = $region3
    $region8: #{tpu_custom_call.1} parent=1 // loop_exit
      _
    %678 = vsyncpa [#allocation3], 1
    %s679 = scalar_lea.sflag [#allocation3], 1
    %680 = vsyncpa %s679, 1

</llo_original>
